<compile_context>
chip_gen: v5e
topology: v5e:2x2
jax: 0.10.0
libtpu: 0.0.40
codegen_flags: <defaults>
</compile_context>

<pallas_src>
import functools

import jax
import jax.numpy as jnp
from jax import lax
from jax.experimental import pallas as pl
from jax.experimental.pallas import tpu as pltpu


def _soft_f1_kernel(inputs_ref, targets_ref, weights_ref, out_ref,
                    tp_acc, sp_acc, cnt_acc, *, epsilon, batch, block_b,
                    mask_overhang):
    pid = pl.program_id(0)
    last = pl.num_programs(0) - 1

    @pl.when(pid == 0)
    def _init():
        tp_acc[...] = jnp.zeros_like(tp_acc)
        sp_acc[...] = jnp.zeros_like(sp_acc)
        cnt_acc[...] = jnp.zeros_like(cnt_acc)

    x = inputs_ref[...].astype(jnp.float32)            # (TB, C)
    tgt = targets_ref[...]                             # (TB, 1) int32
    TB, C = x.shape

    if mask_overhang:
        # Only compiled in when batch % block_b != 0: rows past `batch` in the
        # last tile hold undefined data and must not contribute.
        row_ids = pid * block_b + lax.broadcasted_iota(jnp.int32, (TB, 1), 0)
        valid_b = row_ids < batch                      # (TB, 1) bool
        valid = valid_b.astype(jnp.float32)            # (TB, 1)
        x = jnp.where(valid_b, x, 0.0)                 # keep exp() finite

    # Row-wise softmax over classes (EXACT reciprocal; fp is later recovered
    # algebraically from sum(probs), which would inherit any approx error).
    m = jnp.max(x, axis=1, keepdims=True)              # (TB, 1)
    e = jnp.exp(x - m)                                 # (TB, C)
    denom = jnp.sum(e, axis=1, keepdims=True)          # (TB, 1)
    recip = 1.0 / denom                                # (TB, 1)
    if mask_overhang:
        recip = recip * valid                          # mask folded into (TB,1) op
    probs = e * recip                                  # (TB, C)

    # One-hot membership via iota compare (no scatter on TPU).
    class_ids = lax.broadcasted_iota(jnp.int32, (TB, C), 1)
    onehot = class_ids == tgt                          # (TB, C) bool

    tp_elem = jnp.where(onehot, probs, 0.0)            # (TB, C)
    if mask_overhang:
        cnt_elem = jnp.where(onehot, valid, 0.0)       # padded rows never count
    else:
        cnt_elem = onehot.astype(jnp.float32)

    # Column reductions on the otherwise-idle MXU: ones(1,TB) @ X.
    # fp / fn are recovered at finalize: fp = sum(probs) - tp, fn = count - tp.
    ones_row = jnp.ones((1, TB), dtype=jnp.float32)
    tp_acc[...] += jnp.dot(ones_row, tp_elem, preferred_element_type=jnp.float32)
    sp_acc[...] += jnp.dot(ones_row, probs, preferred_element_type=jnp.float32)
    cnt_acc[...] += jnp.dot(ones_row, cnt_elem, preferred_element_type=jnp.float32)

    @pl.when(pid == last)
    def _finalize():
        w = weights_ref[...].astype(jnp.float32)       # (1, C)
        tp = tp_acc[...] * w
        fp = (sp_acc[...] - tp_acc[...]) * w
        fn = (cnt_acc[...] - tp_acc[...]) * w
        precision = tp / (tp + fp + epsilon)
        recall = tp / (tp + fn + epsilon)
        soft_f1 = 2.0 * (precision * recall) / (precision + recall + epsilon)
        out_ref[0, 0] = 1.0 - jnp.sum(soft_f1) / jnp.float32(C)


def soft_f1_loss(inputs, targets, class_weights=None, epsilon=1e-6,
                 block_b=2048):
    """inputs: [B, C] logits (f32 or bf16); targets: [B] int class ids.

    bf16 logits are the recommended fast path on bandwidth-bound chips (v5e);
    the kernel up-casts to f32 internally so accumulation precision is
    unchanged.
    """
    B, C = inputs.shape
    if class_weights is None:
        class_weights = jnp.ones((C,), dtype=jnp.float32)
    targets2d = targets.astype(jnp.int32).reshape(B, 1)
    weights2d = class_weights.astype(jnp.float32).reshape(1, C)

    # Tile sizing against a conservative ~40 MiB VMEM budget (fits v7x's
    # 64 MiB physical VMEM): double-buffered input tile + ~6 live f32 (tb, C)
    # temporaries.  Tile must be a multiple of 8 rows whenever B > tile.
    vmem_budget = 40 * 1024 * 1024
    in_bytes = jnp.dtype(inputs.dtype).itemsize
    bytes_per_row = C * (2 * in_bytes + 6 * 4)
    tb_cap = max(8, (vmem_budget // bytes_per_row) // 8 * 8)
    tb = min(int(block_b), int(tb_cap))
    if B <= tb:
        tb = B                              # full-extent block is always legal
    else:
        tb = max(8, (tb // 8) * 8)          # enforce (8,128) sublane constraint
    grid = (pl.cdiv(B, tb),)
    mask_overhang = (B % tb) != 0

    kernel = functools.partial(
        _soft_f1_kernel, epsilon=float(epsilon), batch=B, block_b=tb,
        mask_overhang=mask_overhang)

    out = pl.pallas_call(
        kernel,
        out_shape=jax.ShapeDtypeStruct((1, 1), jnp.float32),
        grid=grid,
        in_specs=[
            pl.BlockSpec((tb, C), lambda i: (i, 0)),    # logits (native dtype)
            pl.BlockSpec((tb, 1), lambda i: (i, 0)),    # targets
            pl.BlockSpec((1, C), lambda i: (0, 0)),     # weights stay resident
        ],
        out_specs=pl.BlockSpec((1, 1), lambda i: (0, 0),
                               memory_space=pltpu.SMEM),
        scratch_shapes=[
            pltpu.VMEM((1, C), jnp.float32),            # tp accumulator
            pltpu.VMEM((1, C), jnp.float32),            # sum(probs) accumulator
            pltpu.VMEM((1, C), jnp.float32),            # per-class count
        ],
        compiler_params=pltpu.CompilerParams(
            dimension_semantics=("arbitrary",),
            vmem_limit_bytes=48 * 1024 * 1024),
    )(inputs, targets2d, weights2d)
    return out[0, 0]


def _reference_soft_f1_loss(inputs, targets, class_weights=None, epsilon=1e-6):
    B, C = inputs.shape
    onehot = jax.nn.one_hot(targets, C, dtype=jnp.float32)
    probs = jax.nn.softmax(inputs.astype(jnp.float32), axis=1)
    tp = jnp.sum(onehot * probs, axis=0)
    fp = jnp.sum((1.0 - onehot) * probs, axis=0)
    fn = jnp.sum(onehot * (1.0 - probs), axis=0)
    if class_weights is not None:
        tp, fp, fn = tp * class_weights, fp * class_weights, fn * class_weights
    precision = tp / (tp + fp + epsilon)
    recall = tp / (tp + fn + epsilon)
    soft_f1 = 2.0 * (precision * recall) / (precision + recall + epsilon)
    return 1.0 - jnp.mean(soft_f1)


if __name__ == "__main__":
    key = jax.random.PRNGKey(0)
    k1, k2, k3, k4, k5, k6, k7 = jax.random.split(key, 7)

    C = 32

    # Case 1: batch divisible by the tile (multi-step accumulation, no mask).
    B1 = 16
    logits1 = jax.random.normal(k1, (B1, C), dtype=jnp.float32)
    targets1 = jax.random.randint(k2, (B1,), 0, C, dtype=jnp.int32)
    w1 = jnp.ones((C,), dtype=jnp.float32)
    loss1 = jax.block_until_ready(
        soft_f1_loss(logits1, targets1, w1, block_b=8))
    ref1 = _reference_soft_f1_loss(logits1, targets1, w1)
    assert jnp.allclose(loss1, ref1, atol=1e-5, rtol=1e-5), (loss1, ref1)

    # Case 2: batch NOT divisible by the tile (exercises pad-row masking).
    B2 = 13
    logits2 = jax.random.normal(k3, (B2, C), dtype=jnp.float32)
    targets2 = jax.random.randint(k4, (B2,), 0, C, dtype=jnp.int32)
    loss2 = jax.block_until_ready(
        soft_f1_loss(logits2, targets2, w1, block_b=8))
    ref2 = _reference_soft_f1_loss(logits2, targets2, w1)
    assert jnp.allclose(loss2, ref2, atol=1e-5, rtol=1e-5), (loss2, ref2)

    # Case 3: default (large) tile, non-uniform class weights, single grid step.
    B3 = 24
    logits3 = jax.random.normal(k5, (B3, C), dtype=jnp.float32)
    targets3 = jax.random.randint(k6, (B3,), 0, C, dtype=jnp.int32)
    w3 = 0.5 + jax.random.uniform(k7, (C,), dtype=jnp.float32)
    loss3 = jax.block_until_ready(soft_f1_loss(logits3, targets3, w3))
    ref3 = _reference_soft_f1_loss(logits3, targets3, w3)
    assert jnp.allclose(loss3, ref3, atol=1e-5, rtol=1e-5), (loss3, ref3)

    print("KERNEL_OK")
</pallas_src>

<mosaic_0001>
module attributes {stable_mosaic.version = 11 : i64} {
  func.func @_soft_f1_kernel(%arg0: i32, %arg1: memref<8x32xf32, #tpu.memory_space<vmem>>, %arg2: memref<8x1xi32, #tpu.memory_space<vmem>>, %arg3: memref<1x32xf32, #tpu.memory_space<vmem>>, %arg4: memref<1x1xf32, #tpu.memory_space<smem>>, %arg5: memref<1x32xf32, #tpu.memory_space<vmem>>, %arg6: memref<1x32xf32, #tpu.memory_space<vmem>>, %arg7: memref<1x32xf32, #tpu.memory_space<vmem>>) attributes {dimension_semantics = [#tpu.dimension_semantics<arbitrary>], iteration_bounds = array<i64: 2>, scalar_prefetch = 0 : i64, scratch_operands = 3 : i64, tpu.core_type = #tpu.core_type<tc>, window_params = [{transform_indices = @transform_0, window_bounds = array<i64: 8, 32>}, {transform_indices = @transform_1, window_bounds = array<i64: 8, 1>}, {pipeline_mode = #tpu.pipeline_mode<synchronous>, transform_indices = @transform_2, window_bounds = array<i64: 1, 32>}, {transform_indices = @transform_3, window_bounds = array<i64: 1, 1>}]} {
    %c0_i32 = arith.constant 0 : i32
    %0 = arith.cmpi eq, %arg0, %c0_i32 : i32
    %1 = arith.extui %0 : i1 to i32
    %c0_i32_0 = arith.constant 0 : i32
    %2 = arith.cmpi ne, %1, %c0_i32_0 : i32
    scf.if %2 {
      %cst_24 = arith.constant 0.000000e+00 : f32
      %39 = vector.broadcast %cst_24 : f32 to vector<1x32xf32>
      %c0_25 = arith.constant 0 : index
      %c0_26 = arith.constant 0 : index
      %40 = vector.load %arg5[%c0_25, %c0_26] : memref<1x32xf32, #tpu.memory_space<vmem>>, vector<1x32xf32>
      tpu.vector_store %arg5[%c0_25, %c0_26], %39 {strides = array<i32>} : memref<1x32xf32, #tpu.memory_space<vmem>>, vector<1x32xf32>,
      %cst_27 = arith.constant 0.000000e+00 : f32
      %41 = vector.broadcast %cst_27 : f32 to vector<1x32xf32>
      %c0_28 = arith.constant 0 : index
      %c0_29 = arith.constant 0 : index
      %42 = vector.load %arg6[%c0_28, %c0_29] : memref<1x32xf32, #tpu.memory_space<vmem>>, vector<1x32xf32>
      tpu.vector_store %arg6[%c0_28, %c0_29], %41 {strides = array<i32>} : memref<1x32xf32, #tpu.memory_space<vmem>>, vector<1x32xf32>,
      %cst_30 = arith.constant 0.000000e+00 : f32
      %43 = vector.broadcast %cst_30 : f32 to vector<1x32xf32>
      %c0_31 = arith.constant 0 : index
      %c0_32 = arith.constant 0 : index
      %44 = vector.load %arg7[%c0_31, %c0_32] : memref<1x32xf32, #tpu.memory_space<vmem>>, vector<1x32xf32>
      tpu.vector_store %arg7[%c0_31, %c0_32], %43 {strides = array<i32>} : memref<1x32xf32, #tpu.memory_space<vmem>>, vector<1x32xf32>,
    } else {
    }
    %c0 = arith.constant 0 : index
    %c0_1 = arith.constant 0 : index
    %3 = vector.load %arg1[%c0, %c0_1] : memref<8x32xf32, #tpu.memory_space<vmem>>, vector<8x32xf32>
    %c0_2 = arith.constant 0 : index
    %c0_3 = arith.constant 0 : index
    %4 = vector.load %arg2[%c0_2, %c0_3] : memref<8x1xi32, #tpu.memory_space<vmem>>, vector<8x1xi32>
    %cst = arith.constant dense<0xFF800000> : vector<8xf32>
    %5 = vector.multi_reduction <maximumf>, %3, %cst [1] : vector<8x32xf32> to vector<8xf32>
    %6 = vector.shape_cast %5 : vector<8xf32> to vector<8x1xf32>
    %7 = vector.broadcast %6 : vector<8x1xf32> to vector<8x32xf32>
    %8 = arith.subf %3, %7 : vector<8x32xf32>
    %9 = math.exp %8 : vector<8x32xf32>
    %cst_4 = arith.constant dense<0.000000e+00> : vector<8xf32>
    %10 = vector.multi_reduction <add>, %9, %cst_4 [1] : vector<8x32xf32> to vector<8xf32>
    %11 = vector.shape_cast %10 : vector<8xf32> to vector<8x1xf32>
    %cst_5 = arith.constant 1.000000e+00 : f32
    %12 = vector.broadcast %cst_5 : f32 to vector<8x1xf32>
    %13 = arith.divf %12, %11 : vector<8x1xf32>
    %14 = vector.broadcast %13 : vector<8x1xf32> to vector<8x32xf32>
    %15 = arith.mulf %9, %14 : vector<8x32xf32>
    %16 = tpu.iota {dimensions = array<i32: 1>} : vector<8x32xi32>
    %17 = vector.broadcast %4 : vector<8x1xi32> to vector<8x32xi32>
    %18 = arith.cmpi eq, %16, %17 : vector<8x32xi32>
    %cst_6 = arith.constant 0.000000e+00 : f32
    %19 = vector.broadcast %cst_6 : f32 to vector<8x32xf32>
    %20 = arith.select %18, %15, %19 : vector<8x32xi1>, vector<8x32xf32>
    %21 = arith.extui %18 : vector<8x32xi1> to vector<8x32xi32>
    %22 = arith.sitofp %21 : vector<8x32xi32> to vector<8x32xf32>
    %cst_7 = arith.constant 1.000000e+00 : f32
    %23 = vector.broadcast %cst_7 : f32 to vector<1x8xf32>
    %c0_8 = arith.constant 0 : index
    %c0_9 = arith.constant 0 : index
    %24 = vector.load %arg5[%c0_8, %c0_9] : memref<1x32xf32, #tpu.memory_space<vmem>>, vector<1x32xf32>
    %cst_10 = arith.constant dense<0.000000e+00> : vector<1x32xf32>
    %25 = tpu.matmul %23, %20, %cst_10 {dimension_numbers = #tpu.dot_dimension_numbers<[1], [0], [0], [1], [0, 0, 1, 1], [], []>} : vector<1x8xf32>, vector<8x32xf32>, vector<1x32xf32> -> vector<1x32xf32>
    %26 = arith.addf %24, %25 : vector<1x32xf32>
    %c0_11 = arith.constant 0 : index
    %c0_12 = arith.constant 0 : index
    %27 = vector.load %arg5[%c0_11, %c0_12] : memref<1x32xf32, #tpu.memory_space<vmem>>, vector<1x32xf32>
    tpu.vector_store %arg5[%c0_11, %c0_12], %26 {strides = array<i32>} : memref<1x32xf32, #tpu.memory_space<vmem>>, vector<1x32xf32>,
    %c0_13 = arith.constant 0 : index
    %c0_14 = arith.constant 0 : index
    %28 = vector.load %arg6[%c0_13, %c0_14] : memref<1x32xf32, #tpu.memory_space<vmem>>, vector<1x32xf32>
    %cst_15 = arith.constant dense<0.000000e+00> : vector<1x32xf32>
    %29 = tpu.matmul %23, %15, %cst_15 {dimension_numbers = #tpu.dot_dimension_numbers<[1], [0], [0], [1], [0, 0, 1, 1], [], []>} : vector<1x8xf32>, vector<8x32xf32>, vector<1x32xf32> -> vector<1x32xf32>
    %30 = arith.addf %28, %29 : vector<1x32xf32>
    %c0_16 = arith.constant 0 : index
    %c0_17 = arith.constant 0 : index
    %31 = vector.load %arg6[%c0_16, %c0_17] : memref<1x32xf32, #tpu.memory_space<vmem>>, vector<1x32xf32>
    tpu.vector_store %arg6[%c0_16, %c0_17], %30 {strides = array<i32>} : memref<1x32xf32, #tpu.memory_space<vmem>>, vector<1x32xf32>,
    %c0_18 = arith.constant 0 : index
    %c0_19 = arith.constant 0 : index
    %32 = vector.load %arg7[%c0_18, %c0_19] : memref<1x32xf32, #tpu.memory_space<vmem>>, vector<1x32xf32>
    %cst_20 = arith.constant dense<0.000000e+00> : vector<1x32xf32>
    %33 = tpu.matmul %23, %22, %cst_20 {dimension_numbers = #tpu.dot_dimension_numbers<[1], [0], [0], [1], [0, 0, 1, 1], [], []>} : vector<1x8xf32>, vector<8x32xf32>, vector<1x32xf32> -> vector<1x32xf32>
    %34 = arith.addf %32, %33 : vector<1x32xf32>
    %c0_21 = arith.constant 0 : index
    %c0_22 = arith.constant 0 : index
    %35 = vector.load %arg7[%c0_21, %c0_22] : memref<1x32xf32, #tpu.memory_space<vmem>>, vector<1x32xf32>
    tpu.vector_store %arg7[%c0_21, %c0_22], %34 {strides = array<i32>} : memref<1x32xf32, #tpu.memory_space<vmem>>, vector<1x32xf32>,
    %c1_i32 = arith.constant 1 : i32
    %36 = arith.cmpi eq, %arg0, %c1_i32 : i32
    %37 = arith.extui %36 : i1 to i32
    %c0_i32_23 = arith.constant 0 : i32
    %38 = arith.cmpi ne, %37, %c0_i32_23 : i32
    scf.if %38 {
      %c0_24 = arith.constant 0 : index
      %c0_25 = arith.constant 0 : index
      %39 = vector.load %arg3[%c0_24, %c0_25] : memref<1x32xf32, #tpu.memory_space<vmem>>, vector<1x32xf32>
      %c0_26 = arith.constant 0 : index
      %c0_27 = arith.constant 0 : index
      %40 = vector.load %arg5[%c0_26, %c0_27] : memref<1x32xf32, #tpu.memory_space<vmem>>, vector<1x32xf32>
      %41 = arith.mulf %40, %39 : vector<1x32xf32>
      %c0_28 = arith.constant 0 : index
      %c0_29 = arith.constant 0 : index
      %42 = vector.load %arg6[%c0_28, %c0_29] : memref<1x32xf32, #tpu.memory_space<vmem>>, vector<1x32xf32>
      %c0_30 = arith.constant 0 : index
      %c0_31 = arith.constant 0 : index
      %43 = vector.load %arg5[%c0_30, %c0_31] : memref<1x32xf32, #tpu.memory_space<vmem>>, vector<1x32xf32>
      %44 = arith.subf %42, %43 : vector<1x32xf32>
      %45 = arith.mulf %44, %39 : vector<1x32xf32>
      %c0_32 = arith.constant 0 : index
      %c0_33 = arith.constant 0 : index
      %46 = vector.load %arg7[%c0_32, %c0_33] : memref<1x32xf32, #tpu.memory_space<vmem>>, vector<1x32xf32>
      %c0_34 = arith.constant 0 : index
      %c0_35 = arith.constant 0 : index
      %47 = vector.load %arg5[%c0_34, %c0_35] : memref<1x32xf32, #tpu.memory_space<vmem>>, vector<1x32xf32>
      %48 = arith.subf %46, %47 : vector<1x32xf32>
      %49 = arith.mulf %48, %39 : vector<1x32xf32>
      %50 = arith.addf %41, %45 : vector<1x32xf32>
      %cst_36 = arith.constant 9.99999997E-7 : f32
      %51 = vector.broadcast %cst_36 : f32 to vector<1x32xf32>
      %52 = arith.addf %50, %51 : vector<1x32xf32>
      %53 = arith.divf %41, %52 : vector<1x32xf32>
      %54 = arith.addf %41, %49 : vector<1x32xf32>
      %cst_37 = arith.constant 9.99999997E-7 : f32
      %55 = vector.broadcast %cst_37 : f32 to vector<1x32xf32>
      %56 = arith.addf %54, %55 : vector<1x32xf32>
      %57 = arith.divf %41, %56 : vector<1x32xf32>
      %58 = arith.mulf %53, %57 : vector<1x32xf32>
      %cst_38 = arith.constant 2.000000e+00 : f32
      %59 = vector.broadcast %cst_38 : f32 to vector<1x32xf32>
      %60 = arith.mulf %59, %58 : vector<1x32xf32>
      %61 = arith.addf %53, %57 : vector<1x32xf32>
      %cst_39 = arith.constant 9.99999997E-7 : f32
      %62 = vector.broadcast %cst_39 : f32 to vector<1x32xf32>
      %63 = arith.addf %61, %62 : vector<1x32xf32>
      %64 = arith.divf %60, %63 : vector<1x32xf32>
      %65 = vector.shape_cast %64 : vector<1x32xf32> to vector<1x1x32xf32>
      %cst_40 = arith.constant dense<0.000000e+00> : vector<1xf32>
      %66 = vector.multi_reduction <add>, %65, %cst_40 [1, 2] : vector<1x1x32xf32> to vector<1xf32>
      %67 = vector.shape_cast %66 : vector<1xf32> to vector<1x1x1xf32>
      %68 = vector.extract %67[0, 0, 0] : f32 from vector<1x1x1xf32>
      %cst_41 = arith.constant 3.200000e+01 : f32
      %69 = arith.divf %68, %cst_41 : f32
      %cst_42 = arith.constant 1.000000e+00 : f32
      %70 = arith.subf %cst_42, %69 : f32
      %c0_43 = arith.constant 0 : index
      %c0_44 = arith.constant 0 : index
      %71 = memref.load %arg4[%c0_43, %c0_44] : memref<1x1xf32, #tpu.memory_space<smem>>
      memref.store %70, %arg4[%c0_43, %c0_44] : memref<1x1xf32, #tpu.memory_space<smem>>
    } else {
    }
    return
  }
  func.func @transform_0(%arg0: i32) -> (i32, i32) {
    %c0_i32 = arith.constant 0 : i32
    %c0_i32_0 = arith.constant 0 : i32
    return %arg0, %c0_i32 : i32, i32
  }
  func.func @transform_1(%arg0: i32) -> (i32, i32) {
    %c0_i32 = arith.constant 0 : i32
    %c0_i32_0 = arith.constant 0 : i32
    return %arg0, %c0_i32 : i32, i32
  }
  func.func @transform_2(%arg0: i32) -> (i32, i32) {
    %c0_i32 = arith.constant 0 : i32
    %c0_i32_0 = arith.constant 0 : i32
    %c0_i32_1 = arith.constant 0 : i32
    return %c0_i32, %c0_i32_0 : i32, i32
  }
  func.func @transform_3(%arg0: i32) -> (i32, i32) {
    %c0_i32 = arith.constant 0 : i32
    %c0_i32_0 = arith.constant 0 : i32
    %c0_i32_1 = arith.constant 0 : i32
    return %c0_i32, %c0_i32_0 : i32, i32
  }
}

</mosaic_0001>

<llo_original>
// kernel: tpu_custom_call.1
$region0: #{tpu_custom_call.1}
  #allocation0 [shape = 'u32[]', space=smem, size = 0x4, offset = 0x4, fixed_abs, tag = 'smem constant byte address 0x4 - core index']
  #allocation1 [shape = 'u32[72,128]{1,0:T(1,128)}', space=vmem, size = 0x9000, scoped, tag = 'internal scratch']
  #allocation2 [shape = 'f32[1,32]{1,0:T(1,128)}', space=vmem, size = 0x200, scoped, tag = 'scratch operand']
  #allocation3 [shape = 'f32[1,32]{1,0:T(1,128)}', space=vmem, size = 0x200, scoped, tag = 'scratch operand']
  #allocation4 [shape = 'f32[1,32]{1,0:T(1,128)}', space=vmem, size = 0x200, scoped, tag = 'scratch operand']
  %s0 = inlined_call_operand.vmem [shape: f32[16,32], index: 0, kind: input, shape index: {}]
  %s1 = inlined_call_operand.vmem [shape: s32[16,1], index: 1, kind: input, shape index: {}]
  %s2 = inlined_call_operand.vmem [shape: f32[1,32], index: 2, kind: input, shape index: {}]
  %s3 = inlined_call_operand.hbm [shape: f32[1,1], index: 3, kind: output, shape index: {}]
  %s4 = sld [smem:[#allocation0]]
  $region53: #{tpu_custom_call.1} parent=0
    _
  %s6 = ssub.s32 1, %s4
  %s7 = scalar_select 0, %s6, %s4
  $region1: #{tpu_custom_call.1} parent=0
    #allocation5 [shape = 'u8[512]{0}', space=smem, size = 0x200, scoped, tag = 'output window, operand 0, single buffered']
    #allocation6 [shape = 's32[2]{0}', space=sflag, size = 0x8, scoped, tag = 'scoped memory for tpu_custom_call.1']
    %8 = vsyncpa [#allocation6], 0
    loop: start=0, step=1, limit=4
    $region2: #{tpu_custom_call.1} parent=1 // loop_pre_header
      _
    $region3: #{tpu_custom_call.1} parent=1 // loop_header
      %s10 = sphi 0, %s14
      %p11 = scmp.ge.s32.totalorder %s10, 4
      %s20 = sphi 0, %s22
      %s23 = sphi 0, %s20
      %s24 = sphi 0, %s23
      %s40 = sphi 0, %s24
      %s46 = sphi 0, %s48
      %s49 = sphi 0, %s46
      %s50 = sphi 0, %s49
      %s66 = sphi 0, %s50
      %s70 = sphi 0, %s70
      %s72 = sphi 0, %s70
      %s73 = sphi 0, %s72
      %s87 = sphi 0, %s73
      %s91 = sphi 0, %s91
      %s93 = sphi 0, %s91
      %s94 = sphi 0, %s93
      %s108 = sphi 0, %s94
    $region4: #{tpu_custom_call.1} parent=1 // loop_header_branch
      %13 = sbr.rel (%p11) target = $region8
    $region5: #{tpu_custom_call.1} parent=1 // loop_body
      %s15 = ssub.s32 %s10, 1
      %s16 = ssub.s32 %s10, 2
      %s17 = sadd.s32 %s10, 1
      %s18 = ssub.s32 %s10, %s17
      %p19 = scmp.eq.s32.totalorder %s18, 0
      %s21 = sadd.s32 %s20, 1
      %s22 = scalar_select %p19, %s20, %s21
      %p25 = pneg %p19
      %p26 = scmp.eq.s32.totalorder %s10, 1
      %p27 = por %p25, %p26
      %p28 = scmp.ne.s32.totalorder %s20, %s23
      %p29 = scmp.eq.s32.totalorder %s10, 0
      %p30 = por %p28, %p29
      %p31 = scmp.ne.s32.totalorder %s20, %s23
      %p32 = scmp.eq.s32.totalorder %s15, 1
      %p33 = por %p31, %p32
      %p34 = scmp.ne.s32.totalorder %s23, %s24
      %p35 = scmp.eq.s32.totalorder %s15, 0
      %p36 = por %p34, %p35
      %p37 = scmp.ne.s32.totalorder %s23, %s24
      %p38 = scmp.eq.s32.totalorder %s16, 1
      %p39 = por %p37, %p38
      %p41 = scmp.ne.s32.totalorder %s24, %s40
      %p42 = scmp.eq.s32.totalorder %s16, 0
      %p43 = por %p41, %p42
      %s44 = ssub.s32 %s10, %s17
      %p45 = scmp.eq.s32.totalorder %s44, 0
      %s47 = sadd.s32 %s46, 1
      %s48 = scalar_select %p45, %s46, %s47
      %p51 = pneg %p45
      %p52 = scmp.eq.s32.totalorder %s10, 1
      %p53 = por %p51, %p52
      %p54 = scmp.ne.s32.totalorder %s46, %s49
      %p55 = scmp.eq.s32.totalorder %s10, 0
      %p56 = por %p54, %p55
      %p57 = scmp.ne.s32.totalorder %s46, %s49
      %p58 = scmp.eq.s32.totalorder %s15, 1
      %p59 = por %p57, %p58
      %p60 = scmp.ne.s32.totalorder %s49, %s50
      %p61 = scmp.eq.s32.totalorder %s15, 0
      %p62 = por %p60, %p61
      %p63 = scmp.ne.s32.totalorder %s49, %s50
      %p64 = scmp.eq.s32.totalorder %s16, 1
      %p65 = por %p63, %p64
      %p67 = scmp.ne.s32.totalorder %s50, %s66
      %p68 = scmp.eq.s32.totalorder %s16, 0
      %p69 = por %p67, %p68
      %s71 = sadd.s32 %s70, 1
      %p74 = scmp.eq.s32.totalorder %s10, 1
      %p75 = scmp.ne.s32.totalorder %s70, %s72
      %p76 = scmp.eq.s32.totalorder %s10, 0
      %p77 = por %p75, %p76
      %p78 = scmp.ne.s32.totalorder %s70, %s72
      %p79 = scmp.eq.s32.totalorder %s15, 1
      %p80 = por %p78, %p79
      %p81 = scmp.ne.s32.totalorder %s72, %s73
      %p82 = scmp.eq.s32.totalorder %s15, 0
      %p83 = por %p81, %p82
      %p84 = scmp.ne.s32.totalorder %s72, %s73
      %p85 = scmp.eq.s32.totalorder %s16, 1
      %p86 = por %p84, %p85
      %p88 = scmp.ne.s32.totalorder %s73, %s87
      %p89 = scmp.eq.s32.totalorder %s16, 0
      %p90 = por %p88, %p89
      %s92 = sadd.s32 %s91, 1
      %p95 = scmp.eq.s32.totalorder %s10, 1
      %p96 = scmp.ne.s32.totalorder %s91, %s93
      %p97 = scmp.eq.s32.totalorder %s10, 0
      %p98 = por %p96, %p97
      %p99 = scmp.ne.s32.totalorder %s91, %s93
      %p100 = scmp.eq.s32.totalorder %s15, 1
      %p101 = por %p99, %p100
      %p102 = scmp.ne.s32.totalorder %s93, %s94
      %p103 = scmp.eq.s32.totalorder %s15, 0
      %p104 = por %p102, %p103
      %p105 = scmp.ne.s32.totalorder %s93, %s94
      %p106 = scmp.eq.s32.totalorder %s16, 1
      %p107 = por %p105, %p106
      %p109 = scmp.ne.s32.totalorder %s94, %s108
      %p110 = scmp.eq.s32.totalorder %s16, 0
      %p111 = por %p109, %p110
      %p112 = scmp.le.s32.totalorder 1, %s10
      %p113 = scmp.lt.s32.totalorder %s10, 3
      %p114 = pnand %p112, %p113
      %p115 = pneg %p114
      // Predicated region
      $region9: #{tpu_custom_call.1} parent=5 // pred_check
        _
      $region10: #{tpu_custom_call.1} parent=5 // pred_check_branch
        %117 = sbr.rel (%p114) target = $region12
      $region11: #{tpu_custom_call.1} parent=5 // pred_region
        %s118 = ssub.s32 %s10, 1
        // Predicated region
        $region13: #{tpu_custom_call.1} parent=11 // pred_check
          %p119 = pneg %p83
        $region14: #{tpu_custom_call.1} parent=11 // pred_check_branch
          %121 = sbr.rel (%p119) target = $region16
        $region15: #{tpu_custom_call.1} parent=11 // pred_region
          _
        $region16: #{tpu_custom_call.1} parent=11 // pred_fallthru
          _
      $region12: #{tpu_custom_call.1} parent=5 // pred_fallthru
        _
      %p122 = scmp.lt.s32.totalorder %s10, 2
      // Predicated region
      $region17: #{tpu_custom_call.1} parent=5 // pred_check
        %p123 = pneg %p122
      $region18: #{tpu_custom_call.1} parent=5 // pred_check_branch
        %125 = sbr.rel (%p123) target = $region20
      $region19: #{tpu_custom_call.1} parent=5 // pred_region
        // Predicated region
        $region21: #{tpu_custom_call.1} parent=19 // pred_check
          %p126 = pneg %p30
        $region22: #{tpu_custom_call.1} parent=19 // pred_check_branch
          %128 = sbr.rel (%p126) target = $region24
        $region23: #{tpu_custom_call.1} parent=19 // pred_region
          %p129 = scmp.lt.s32.totalorder %s10, 1
          %s130 = scalar_select %p129, %s10, 1
          %s131 = smul.addr %s130, 8
          %s132 = scalar_lea.vmem %s0, %s131
        $region24: #{tpu_custom_call.1} parent=19 // pred_fallthru
          _
        // Predicated region
        $region25: #{tpu_custom_call.1} parent=19 // pred_check
          %p133 = pneg %p56
        $region26: #{tpu_custom_call.1} parent=19 // pred_check_branch
          %135 = sbr.rel (%p133) target = $region28
        $region27: #{tpu_custom_call.1} parent=19 // pred_region
          %p136 = scmp.lt.s32.totalorder %s10, 1
          %s137 = scalar_select %p136, %s10, 1
          %s138 = smul.addr %s137, 8
          %s139 = scalar_lea.vmem %s1, %s138
        $region28: #{tpu_custom_call.1} parent=19 // pred_fallthru
          _
      $region20: #{tpu_custom_call.1} parent=5 // pred_fallthru
        _
      %p140 = scmp.le.s32.totalorder 1, %s10
      %p141 = scmp.lt.s32.totalorder %s10, 3
      %p142 = pnand %p140, %p141
      %p143 = pneg %p142
      // Predicated region
      $region29: #{tpu_custom_call.1} parent=5 // pred_check
        _
      $region30: #{tpu_custom_call.1} parent=5 // pred_check_branch
        %145 = sbr.rel (%p142) target = $region32
      $region31: #{tpu_custom_call.1} parent=5 // pred_region
        %s146 = ssub.s32 %s10, 1
        %p147 = scmp.lt.s32.totalorder %s15, 1
        %s148 = scalar_select %p147, %s15, 1
        %s149 = smul.addr %s148, 8
        %s150 = scalar_lea.vmem %s0, %s149
        %p151 = pneg %p36
        %p152 = pneg %p33
        %p153 = scmp.lt.s32.totalorder %s15, 1
        %s154 = scalar_select %p153, %s15, 1
        %s155 = smul.addr %s154, 8
        %s156 = scalar_lea.vmem %s1, %s155
        %p157 = pneg %p62
        %p158 = pneg %p59
        %p159 = pneg %p83
        %p160 = pneg %p80
        %p161 = pneg %p104
        %p162 = pneg %p101
        %p163 = scmp.lt.s32.totalorder %s15, 1
        %s164 = scalar_select %p163, %s15, 1
        %s165 = smul.addr %s164, 8
        %s166 = scalar_lea.vmem %s0, %s165
        %p167 = scmp.lt.s32.totalorder %s15, 1
        %s168 = scalar_select %p167, %s15, 1
        %s169 = smul.addr %s168, 8
        %s170 = scalar_lea.vmem %s1, %s169
        %p171 = scmp.eq.s32.totalorder %s15, 0
        // Predicated region
        $region33: #{tpu_custom_call.1} parent=31 // pred_check
          %p172 = pneg %p171
        $region34: #{tpu_custom_call.1} parent=31 // pred_check_branch
          %174 = sbr.rel (%p172) target = $region36
        $region35: #{tpu_custom_call.1} parent=31 // pred_region
          %vm175 = vcmask 253952
          %176 = vst.msk [vmem:[#allocation2] sm:$0x1] %vm175, 0.0
          %177 = vst.msk [vmem:[#allocation3] sm:$0x1] %vm175, 0.0
          %178 = vst.msk [vmem:[#allocation4] sm:$0x1] %vm175, 0.0
        $region36: #{tpu_custom_call.1} parent=31 // pred_fallthru
          _
        %v179 = vld [vmem:[%s166] sm:$0xff]
        %v180 = vld [vmem:[%s170] sm:$0xff]
        %vm181 = vcmask 261120
        %v182 = vsel %vm181, %v179, -inf
        %183 = vmax.xlane.f32.xlu0 %v182
        %v184 = vpop.xlane.xlu0 %183
        %v185 = vsub.f32 %v179, %v184
        %v186 = vmul.f32 %v185, 1.442695
        %v187 = vpow.pop %v186
        %v188 = vsel %vm181, %v187, 0.0
        %189 = vadd.xlane.f32.xlu0 %v188
        %v190 = vpop.xlane.xlu0 %189
        %v191 = vrcp.pop %v190
        %v192 = vmul.f32 %v190, %v191
        %v193 = vsub.f32 1.0, %v192
        %v194 = vmul.f32 %v191, %v193
        %v195 = vadd.f32 %v191, %v194
        %vm196 = vweird.f32 %v190
        %vm197 = vweird.f32 %v191
        %vm198 = vmor %vm196, %vm197
        %v199 = vsel %vm198, %v191, %v195
        %v200 = vand.u32 2147483647, %v190
        %vm201 = vcmp.eq.f32.partialorder %v200, 8.507059e+37
        %v202 = vand.u32 %v190, 2147483648
        %v203 = vor.u32 1.1754944e-38, %v202
        %v204 = vsel %vm201, %v203, %v199
        %v205 = vmul.f32 1.0, %v204
        %v206 = vmul.f32 %v187, %v205
        %v207 = vlaneseq
        %v208 = vand.u32 %v207, 127
        %209 = vset.pattern.permute.xlu0 0
        %210 = vperm.xlu0 %209, %v180
        %v211 = vpop.permute.xlu0 %210
        %vm212 = vcmp.eq.s32.totalorder %v208, %v211
        %v213 = vsel %vm212, %v206, 0.0
        %v214 = vsel %vm212, 1, 0
        %v215 = vcvt.s32.f32 %v214
        %v216 = vld [vmem:[#allocation2] sm:$0x1]
        %vm217 = vcmask 64512
        %v219 = vsel %vm217, 1.0, 0
        %221 = vmatpush.msra.mxu0 0.0
        %222 = vmatpush.msra.mxu0 0.0
        %223 = vmatpush.msra.mxu0 0.0
        %224 = vmatpush.msra.mxu0 0.0
        %225 = vmatpush.msra.mxu0 0.0
        %226 = vmatpush.msra.mxu0 0.0
        %227 = vmatpush.msra.mxu0 0.0
        %228 = vmatpush.msra.mxu0 0.0
        %229 = vmatpush.msra.mxu0 0.0
        %230 = vmatpush.msra.mxu0 0.0
        %231 = vmatpush.msra.mxu0 0.0
        %232 = vmatpush.msra.mxu0 0.0
        %233 = vmatpush.msra.mxu0 0.0
        %234 = vmatpush.msra.mxu0 0.0
        %235 = vmatpush.msra.mxu0 0.0
        %236 = vmatpush.msra.mxu0 %v213
        %237 = vmatmul.f32.gmra.mxu0 %v219
        %v238 = vpop.f32.mrf.mxu0
        %v239 = vadd.f32 0.0, %v238
        %240 = vdwg.mxu0
        %v241 = vadd.f32 %v216, %v239
        %vm242 = vcmask 253952
        %243 = vst.msk [vmem:[#allocation2] sm:$0x1] %vm242, %v241
        %v244 = vld [vmem:[#allocation3] sm:$0x1]
        %245 = vmatpush.msra.mxu0 0.0
        %246 = vmatpush.msra.mxu0 0.0
        %247 = vmatpush.msra.mxu0 0.0
        %248 = vmatpush.msra.mxu0 0.0
        %249 = vmatpush.msra.mxu0 0.0
        %250 = vmatpush.msra.mxu0 0.0
        %251 = vmatpush.msra.mxu0 0.0
        %252 = vmatpush.msra.mxu0 0.0
        %253 = vmatpush.msra.mxu0 0.0
        %254 = vmatpush.msra.mxu0 0.0
        %255 = vmatpush.msra.mxu0 0.0
        %256 = vmatpush.msra.mxu0 0.0
        %257 = vmatpush.msra.mxu0 0.0
        %258 = vmatpush.msra.mxu0 0.0
        %259 = vmatpush.msra.mxu0 0.0
        %260 = vmatpush.msra.mxu0 %v206
        %261 = vmatmul.f32.gmra.mxu0 %v219
        %v262 = vpop.f32.mrf.mxu0
        %v263 = vadd.f32 0.0, %v262
        %264 = vdwg.mxu0
        %v265 = vadd.f32 %v244, %v263
        %266 = vst.msk [vmem:[#allocation3] sm:$0x1] %vm242, %v265
        %v267 = vld [vmem:[#allocation4] sm:$0x1]
        %268 = vmatpush.msra.mxu0 0.0
        %269 = vmatpush.msra.mxu0 0.0
        %270 = vmatpush.msra.mxu0 0.0
        %271 = vmatpush.msra.mxu0 0.0
        %272 = vmatpush.msra.mxu0 0.0
        %273 = vmatpush.msra.mxu0 0.0
        %274 = vmatpush.msra.mxu0 0.0
        %275 = vmatpush.msra.mxu0 0.0
        %276 = vmatpush.msra.mxu0 0.0
        %277 = vmatpush.msra.mxu0 0.0
        %278 = vmatpush.msra.mxu0 0.0
        %279 = vmatpush.msra.mxu0 0.0
        %280 = vmatpush.msra.mxu0 0.0
        %281 = vmatpush.msra.mxu0 0.0
        %282 = vmatpush.msra.mxu0 0.0
        %283 = vmatpush.msra.mxu0 %v215
        %284 = vmatmul.f32.gmra.mxu0 %v219
        %v285 = vpop.f32.mrf.mxu0
        %v286 = vadd.f32 0.0, %v285
        %287 = vdwg.mxu0
        %v288 = vadd.f32 %v267, %v286
        %289 = vst.msk [vmem:[#allocation4] sm:$0x1] %vm242, %v288
        %p290 = scmp.eq.s32.totalorder %s15, 1
        // Predicated region
        $region37: #{tpu_custom_call.1} parent=31 // pred_check
          %p291 = pneg %p290
        $region38: #{tpu_custom_call.1} parent=31 // pred_check_branch
          %293 = sbr.rel (%p291) target = $region40
        $region39: #{tpu_custom_call.1} parent=31 // pred_region
          %v294 = vld [vmem:[%s2] sm:$0x1]
          %v295 = vld [vmem:[#allocation2] sm:$0x1]
          %v296 = vmul.f32 %v295, %v294
          %v297 = vld [vmem:[#allocation3] sm:$0x1]
          %v298 = vsub.f32 %v297, %v295
          %v299 = vmul.f32 %v298, %v294
          %v300 = vld [vmem:[#allocation4] sm:$0x1]
          %v301 = vsub.f32 %v300, %v295
          %v302 = vmul.f32 %v301, %v294
          %v303 = vadd.f32 %v296, %v299
          %v304 = vadd.f32 %v303, 1e-06
          %v305 = vrcp.pop %v304
          %v306 = vmul.f32 %v304, %v305
          %v307 = vsub.f32 1.0, %v306
          %v308 = vmul.f32 %v305, %v307
          %v309 = vadd.f32 %v305, %v308
          %vm310 = vweird.f32 %v304
          %vm311 = vweird.f32 %v305
          %vm312 = vmor %vm310, %vm311
          %v313 = vsel %vm312, %v305, %v309
          %v314 = vand.u32 2147483647, %v304
          %vm315 = vcmp.eq.f32.partialorder %v314, 8.507059e+37
          %v316 = vand.u32 %v304, 2147483648
          %v317 = vor.u32 1.1754944e-38, %v316
          %v318 = vsel %vm315, %v317, %v313
          %v319 = vmul.f32 %v296, %v318
          %v320 = vadd.f32 %v296, %v302
          %v321 = vadd.f32 %v320, 1e-06
          %v322 = vrcp.pop %v321
          %v323 = vmul.f32 %v321, %v322
          %v324 = vsub.f32 1.0, %v323
          %v325 = vmul.f32 %v322, %v324
          %v326 = vadd.f32 %v322, %v325
          %vm327 = vweird.f32 %v321
          %vm328 = vweird.f32 %v322
          %vm329 = vmor %vm327, %vm328
          %v330 = vsel %vm329, %v322, %v326
          %v331 = vand.u32 2147483647, %v321
          %vm332 = vcmp.eq.f32.partialorder %v331, 8.507059e+37
          %v333 = vand.u32 %v321, 2147483648
          %v334 = vor.u32 1.1754944e-38, %v333
          %v335 = vsel %vm332, %v334, %v330
          %v336 = vmul.f32 %v296, %v335
          %v337 = vmul.f32 %v319, %v336
          %v338 = vmul.f32 %v337, 2.0
          %v339 = vadd.f32 %v319, %v336
          %v340 = vadd.f32 %v339, 1e-06
          %v341 = vrcp.pop %v340
          %v342 = vmul.f32 %v340, %v341
          %v343 = vsub.f32 1.0, %v342
          %v344 = vmul.f32 %v341, %v343
          %v345 = vadd.f32 %v341, %v344
          %vm346 = vweird.f32 %v340
          %vm347 = vweird.f32 %v341
          %vm348 = vmor %vm346, %vm347
          %v349 = vsel %vm348, %v341, %v345
          %v350 = vand.u32 2147483647, %v340
          %vm351 = vcmp.eq.f32.partialorder %v350, 8.507059e+37
          %v352 = vand.u32 %v340, 2147483648
          %v353 = vor.u32 1.1754944e-38, %v352
          %v354 = vsel %vm351, %v353, %v349
          %v355 = vmul.f32 %v338, %v354
          %v356 = vsel %vm242, %v355, 0.0
          %357 = vadd.xlane.f32.xlu0 %v356
          %v358 = vpop.xlane.xlu0 %357
          %v359 = vrot.slane %v358, 4
          %v360 = vadd.f32 %v358, %v359
          %v361 = vrot.slane %v360, 2
          %v362 = vadd.f32 %v360, %v361
          %v363 = vrot.slane %v362, 1
          %v364 = vadd.f32 %v362, %v363
          %s365 = vtos %v364
          %v366 = vrcp.pop 32.0
          %v367 = vmul.f32 32.0, %v366
          %v368 = vsub.f32 1.0, %v367
          %v369 = vmul.f32 %v366, %v368
          %v370 = vadd.f32 %v366, %v369
          %vm371 = vweird.f32 %v366
          %v372 = vsel %vm371, %v366, %v370
          %s373 = vtos %v372
          %s374 = smul.f32 %s365, %s373
          %s375 = ssub.f32 1.0, %s374
          %s376 = scalar_lea.smem [#allocation5], 0
          %377 = sst [smem:[%s376]] %s375
        $region40: #{tpu_custom_call.1} parent=31 // pred_fallthru
          _
        // Predicated region
        $region41: #{tpu_custom_call.1} parent=31 // pred_check
          %p378 = pneg %p101
        $region42: #{tpu_custom_call.1} parent=31 // pred_check_branch
          %380 = sbr.rel (%p378) target = $region44
        $region43: #{tpu_custom_call.1} parent=31 // pred_region
          %382 = vsyncadd [#allocation6], 0
          %s384 = sshll.u32 %s3, 4
          %s385 = int_to_ptr.hbm [resolvable:$true] %s384
          %387 = dma.smem_to_hbm [#allocation5], 16, %s385, [#allocation6]
        $region44: #{tpu_custom_call.1} parent=31 // pred_fallthru
          _
        // Predicated region
        $region45: #{tpu_custom_call.1} parent=31 // pred_check
          %p388 = pneg %p101
        $region46: #{tpu_custom_call.1} parent=31 // pred_check_branch
          %390 = sbr.rel (%p388) target = $region48
        $region47: #{tpu_custom_call.1} parent=31 // pred_region
          %392 = dma.done [#allocation6], 16
        $region48: #{tpu_custom_call.1} parent=31 // pred_fallthru
          _
        %393 = sfence
      $region32: #{tpu_custom_call.1} parent=5 // pred_fallthru
        _
      %p394 = scmp.le.s32.totalorder 2, %s10
      // Predicated region
      $region49: #{tpu_custom_call.1} parent=5 // pred_check
        %p395 = pneg %p394
      $region50: #{tpu_custom_call.1} parent=5 // pred_check_branch
        %397 = sbr.rel (%p395) target = $region52
      $region51: #{tpu_custom_call.1} parent=5 // pred_region
        %s398 = ssub.s32 %s10, 2
      $region52: #{tpu_custom_call.1} parent=5 // pred_fallthru
        _
    $region6: #{tpu_custom_call.1} parent=1 // loop_footer
      %s14 = sadd.s32 1, %s10
    $region7: #{tpu_custom_call.1} parent=1 // loop_footer_branch
      %9 = sbr.rel target = $region3
    $region8: #{tpu_custom_call.1} parent=1 // loop_exit
      _
    %399 = vsyncpa [#allocation6], 1
    %s400 = scalar_lea.sflag [#allocation6], 1
    %401 = vsyncpa %s400, 1

</llo_original>
